<compile_context>
chip_gen: v7x
topology: tpu7x:2x2x1
jax: 0.10.0
libtpu: 0.0.40
codegen_flags: <defaults>
</compile_context>

<pallas_src>
import functools

import jax
import jax.numpy as jnp
from jax import lax
from jax.experimental import pallas as pl
from jax.experimental.pallas import tpu as pltpu


def _round_up(x, m):
    return ((x + m - 1) // m) * m


def _cdiv(a, b):
    return -(-a // b)


def normed_linear_kernel(x_ref, w_ref, o_ref):
    # x_ref: (tm, f_in)       f32        -- row tile of x (un-normalized)
    # w_ref: (f_in, f_out_p)  dot_dtype  -- resident weight, pre-scaled by
    #                                       10 / max(||w_col||, eps)
    # o_ref: (tm, f_out_p)    f32
    x = x_ref[...]                                           # f32 row tile

    # Per-row squared L2 norm in f32; rsqrt goes to the EUP slot.
    # 1 / max(||x||, 1e-12)  ==  rsqrt(max(||x||^2, 1e-24))
    row_ss = jnp.sum(x * x, axis=1, keepdims=True)           # (tm, 1)
    row_scale = lax.rsqrt(jnp.maximum(row_ss, jnp.float32(1e-24)))

    # MXU matmul on un-normalized rows; the row norm is folded into the output.
    acc = jnp.dot(x.astype(w_ref.dtype), w_ref[...],
                  preferred_element_type=jnp.float32)        # (tm, f_out_p)

    o_ref[...] = (acc * row_scale).astype(o_ref.dtype)


@functools.partial(jax.jit, static_argnames=("tm", "dot_dtype"))
def normed_linear(x, weight, *, tm=256, dot_dtype=jnp.bfloat16):
    """NormedLinear forward.

    x:      (N, in_features)            float32
    weight: (in_features, out_features) float32
    dot_dtype: MXU operand dtype. bf16 (default) = fast path on v6e/v7x;
               float32 = bit-accurate-to-reference path.
    """
    N, f_in = x.shape
    f_out = weight.shape[1]
    eps = jnp.float32(1e-12)

    # ---- tiling: lane-dense output, >=2 grid steps when possible ----
    f_out_p = _round_up(f_out, 128)
    n8 = _round_up(N, 8)
    num_tiles = max(1, _cdiv(n8, tm))
    if num_tiles == 1 and n8 > 8:
        num_tiles = 2                      # keep both v7x TensorCores busy
    tm_eff = _round_up(_cdiv(n8, num_tiles), 8)
    num_tiles = _cdiv(n8, tm_eff)
    rows_p = num_tiles * tm_eff

    # ---- padding (zero rows/cols contribute nothing to the sliced result) ----
    x_p = x.astype(jnp.float32)
    if rows_p != N:
        x_p = jnp.zeros((rows_p, f_in), jnp.float32).at[:N, :].set(x_p)

    w_f32 = weight.astype(jnp.float32)
    if f_out_p != f_out:
        w_f32 = jnp.zeros((f_in, f_out_p), jnp.float32).at[:, :f_out].set(w_f32)

    # Fold the batch-independent column norm AND the 10x into the weight once.
    w_col_norm = jnp.sqrt(jnp.sum(w_f32 * w_f32, axis=0, keepdims=True))
    w_scaled = (w_f32 * (jnp.float32(10.0) / jnp.maximum(w_col_norm, eps))
                ).astype(dot_dtype)                          # (f_in, f_out_p)

    # ---- explicit VMEM budget (double-buffered tiles + resident weight) ----
    est = (2 * tm_eff * f_in * 4                          # x tiles (f32, 2 bufs)
           + 2 * tm_eff * f_out_p * 4                     # out tiles (f32, 2 bufs)
           + 2 * f_in * f_out_p * jnp.dtype(dot_dtype).itemsize)  # weight
    vmem_limit = int(min(max(2 * est, 32 * 1024 * 1024), 100 * 1024 * 1024))

    out_p = pl.pallas_call(
        normed_linear_kernel,
        out_shape=jax.ShapeDtypeStruct((rows_p, f_out_p), jnp.float32),
        grid_spec=pl.GridSpec(
            grid=(num_tiles,),
            in_specs=[
                pl.BlockSpec((tm_eff, f_in), lambda i: (i, 0)),    # x row tile
                pl.BlockSpec((f_in, f_out_p), lambda i: (0, 0)),   # weight (resident)
            ],
            out_specs=pl.BlockSpec((tm_eff, f_out_p), lambda i: (i, 0)),
        ),
        compiler_params=pltpu.CompilerParams(
            dimension_semantics=("parallel",),
            vmem_limit_bytes=vmem_limit,
        ),
    )(x_p, w_scaled)

    return out_p[:N, :f_out]


def init_normed_linear_weight(key, in_features, out_features):
    """Deterministic replica of:
       weight.uniform_(-1, 1).renorm_(2, 1, 1e-05).mul_(100000.0)"""
    w = jax.random.uniform(key, (in_features, out_features),
                           dtype=jnp.float32, minval=-1.0, maxval=1.0)
    col_norm = jnp.sqrt(jnp.sum(w * w, axis=0, keepdims=True))
    maxnorm = 1e-5
    scale = jnp.where(col_norm > maxnorm, maxnorm / (col_norm + 1e-7), 1.0)
    return w * scale * 1e5


def normed_linear_ref(x, weight):
    eps = 1e-12
    xn = x / jnp.maximum(jnp.linalg.norm(x, axis=1, keepdims=True), eps)
    wn = weight / jnp.maximum(jnp.linalg.norm(weight, axis=0, keepdims=True), eps)
    return 10.0 * (xn @ wn)


if __name__ == "__main__":
    key = jax.random.PRNGKey(0)
    k_x, k_w, k_x2, k_w2 = jax.random.split(key, 4)

    # Small case (matches the module's natural head shapes): exercises f_out
    # padding (8 -> 128) and a 2-step parallel grid.
    N, in_features, out_features = 16, 32, 8
    x = jax.random.normal(k_x, (N, in_features), dtype=jnp.float32)
    weight = init_normed_linear_weight(k_w, in_features, out_features)
    ref = normed_linear_ref(x, weight)

    # Exact f32 MXU path: tight tolerance.
    out_f32 = jax.block_until_ready(
        normed_linear(x, weight, dot_dtype=jnp.float32))
    assert out_f32.shape == (N, out_features)
    assert jnp.allclose(out_f32, ref, atol=1e-4, rtol=1e-4), (
        f"f32 path max abs err = {jnp.max(jnp.abs(out_f32 - ref))}")

    # bf16 MXU path (default, v6e/v7x fast path): looser tolerance.
    out_bf16 = jax.block_until_ready(normed_linear(x, weight))
    assert out_bf16.shape == (N, out_features)
    assert jnp.max(jnp.abs(out_bf16 - ref)) < 0.15, (
        f"bf16 path max abs err = {jnp.max(jnp.abs(out_bf16 - ref))}")

    # Larger case: multi-tile rows + non-multiple-of-128 f_out padding.
    N2, f_in2, f_out2 = 512, 128, 200
    x2 = jax.random.normal(k_x2, (N2, f_in2), dtype=jnp.float32)
    w2 = init_normed_linear_weight(k_w2, f_in2, f_out2)
    ref2 = normed_linear_ref(x2, w2)
    out2 = jax.block_until_ready(
        normed_linear(x2, w2, tm=256, dot_dtype=jnp.float32))
    assert out2.shape == (N2, f_out2)
    assert jnp.allclose(out2, ref2, atol=1e-4, rtol=1e-4), (
        f"tiled f32 path max abs err = {jnp.max(jnp.abs(out2 - ref2))}")

    print("KERNEL_OK")
</pallas_src>

<mosaic_0001>
module attributes {stable_mosaic.version = 11 : i64} {
  func.func @normed_linear_kernel(%arg0: i32, %arg1: memref<8x32xf32, #tpu.memory_space<vmem>>, %arg2: memref<32x128xf32, #tpu.memory_space<vmem>>, %arg3: memref<8x128xf32, #tpu.memory_space<vmem>>) attributes {dimension_semantics = [#tpu.dimension_semantics<parallel>], iteration_bounds = array<i64: 2>, scalar_prefetch = 0 : i64, scratch_operands = 0 : i64, tpu.core_type = #tpu.core_type<tc>, window_params = [{transform_indices = @transform_0, window_bounds = array<i64: 8, 32>}, {pipeline_mode = #tpu.pipeline_mode<synchronous>, transform_indices = @transform_1, window_bounds = array<i64: 32, 128>}, {transform_indices = @transform_2, window_bounds = array<i64: 8, 128>}]} {
    %c0 = arith.constant 0 : index
    %c0_0 = arith.constant 0 : index
    %0 = vector.load %arg1[%c0, %c0_0] : memref<8x32xf32, #tpu.memory_space<vmem>>, vector<8x32xf32>
    %1 = arith.mulf %0, %0 : vector<8x32xf32>
    %cst = arith.constant dense<0.000000e+00> : vector<8xf32>
    %2 = vector.multi_reduction <add>, %1, %cst [1] : vector<8x32xf32> to vector<8xf32>
    %3 = vector.shape_cast %2 : vector<8xf32> to vector<8x1xf32>
    %cst_1 = arith.constant 1.000000e-24 : f32
    %4 = vector.broadcast %cst_1 : f32 to vector<8x1xf32>
    %5 = arith.maximumf %3, %4 : vector<8x1xf32>
    %6 = math.rsqrt %5 : vector<8x1xf32>
    %c0_2 = arith.constant 0 : index
    %c0_3 = arith.constant 0 : index
    %7 = vector.load %arg2[%c0_2, %c0_3] : memref<32x128xf32, #tpu.memory_space<vmem>>, vector<32x128xf32>
    %cst_4 = arith.constant dense<0.000000e+00> : vector<8x128xf32>
    %8 = tpu.matmul %0, %7, %cst_4 {dimension_numbers = #tpu.dot_dimension_numbers<[1], [0], [0], [1], [0, 0, 1, 1], [], []>} : vector<8x32xf32>, vector<32x128xf32>, vector<8x128xf32> -> vector<8x128xf32>
    %9 = vector.broadcast %6 : vector<8x1xf32> to vector<8x128xf32>
    %10 = arith.mulf %8, %9 : vector<8x128xf32>
    %c0_5 = arith.constant 0 : index
    %c0_6 = arith.constant 0 : index
    %11 = vector.load %arg3[%c0_5, %c0_6] : memref<8x128xf32, #tpu.memory_space<vmem>>, vector<8x128xf32>
    tpu.vector_store %arg3[%c0_5, %c0_6], %10 {strides = array<i32>} : memref<8x128xf32, #tpu.memory_space<vmem>>, vector<8x128xf32>,
    return
  }
  func.func @transform_0(%arg0: i32) -> (i32, i32) {
    %c0_i32 = arith.constant 0 : i32
    %c0_i32_0 = arith.constant 0 : i32
    return %arg0, %c0_i32 : i32, i32
  }
  func.func @transform_1(%arg0: i32) -> (i32, i32) {
    %c0_i32 = arith.constant 0 : i32
    %c0_i32_0 = arith.constant 0 : i32
    %c0_i32_1 = arith.constant 0 : i32
    return %c0_i32, %c0_i32_0 : i32, i32
  }
  func.func @transform_2(%arg0: i32) -> (i32, i32) {
    %c0_i32 = arith.constant 0 : i32
    %c0_i32_0 = arith.constant 0 : i32
    return %arg0, %c0_i32 : i32, i32
  }
}

</mosaic_0001>

<llo_original>
// kernel: normed_linear.1
$region0: #{normed_linear.1}
  #allocation0 [shape = 'u32[]', space=smem, size = 0x4, offset = 0x4, fixed_abs, tag = 'smem constant byte address 0x4 - core index']
  #allocation1 [shape = 'u32[144,128]{1,0:T(1,128)}', space=vmem, size = 0x12000, scoped, tag = 'internal scratch']
  %s0 = inlined_call_operand.vmem [shape: f32[16,32], index: 0, kind: input, shape index: {}]
  %s1 = inlined_call_operand.vmem [shape: f32[32,128], index: 1, kind: input, shape index: {}]
  %s2 = inlined_call_operand.vmem [shape: f32[16,128], index: 2, kind: output, shape index: {}]
  %s3 = sld [smem:[#allocation0]]
  $region41: #{normed_linear.1} parent=0
    _
  %s5 = ssub.s32 1, %s3
  %s6 = scalar_select 0, %s5, %s3
  loop: start=0, step=1, limit=4
  $region2: #{normed_linear.1} parent=0 // loop_pre_header
    _
  $region3: #{normed_linear.1} parent=0 // loop_header
    %s8 = sphi 0, %s12
    %p9 = scmp.ge.s32.totalorder %s8, 4
    %s18 = sphi 0, %s20
    %s21 = sphi 0, %s18
    %s22 = sphi 0, %s21
    %s38 = sphi 0, %s22
    %s42 = sphi 0, %s42
    %s44 = sphi 0, %s42
    %s45 = sphi 0, %s44
    %s59 = sphi 0, %s45
    %s65 = sphi 0, %s67
    %s68 = sphi 0, %s65
    %s69 = sphi 0, %s68
    %s85 = sphi 0, %s69
  $region4: #{normed_linear.1} parent=0 // loop_header_branch
    %11 = sbr.rel (%p9) target = $region8
  $region5: #{normed_linear.1} parent=0 // loop_body
    %s13 = ssub.s32 %s8, 1
    %s14 = ssub.s32 %s8, 2
    %s15 = sadd.s32 %s8, 1
    %s16 = ssub.s32 %s8, %s15
    %p17 = scmp.eq.s32.totalorder %s16, 0
    %s19 = sadd.s32 %s18, 1
    %s20 = scalar_select %p17, %s18, %s19
    %p23 = pneg %p17
    %p24 = scmp.eq.s32.totalorder %s8, 1
    %p25 = por %p23, %p24
    %p26 = scmp.ne.s32.totalorder %s18, %s21
    %p27 = scmp.eq.s32.totalorder %s8, 0
    %p28 = por %p26, %p27
    %p29 = scmp.ne.s32.totalorder %s18, %s21
    %p30 = scmp.eq.s32.totalorder %s13, 1
    %p31 = por %p29, %p30
    %p32 = scmp.ne.s32.totalorder %s21, %s22
    %p33 = scmp.eq.s32.totalorder %s13, 0
    %p34 = por %p32, %p33
    %p35 = scmp.ne.s32.totalorder %s21, %s22
    %p36 = scmp.eq.s32.totalorder %s14, 1
    %p37 = por %p35, %p36
    %p39 = scmp.ne.s32.totalorder %s22, %s38
    %p40 = scmp.eq.s32.totalorder %s14, 0
    %p41 = por %p39, %p40
    %s43 = sadd.s32 %s42, 1
    %p46 = scmp.eq.s32.totalorder %s8, 1
    %p47 = scmp.ne.s32.totalorder %s42, %s44
    %p48 = scmp.eq.s32.totalorder %s8, 0
    %p49 = por %p47, %p48
    %p50 = scmp.ne.s32.totalorder %s42, %s44
    %p51 = scmp.eq.s32.totalorder %s13, 1
    %p52 = por %p50, %p51
    %p53 = scmp.ne.s32.totalorder %s44, %s45
    %p54 = scmp.eq.s32.totalorder %s13, 0
    %p55 = por %p53, %p54
    %p56 = scmp.ne.s32.totalorder %s44, %s45
    %p57 = scmp.eq.s32.totalorder %s14, 1
    %p58 = por %p56, %p57
    %p60 = scmp.ne.s32.totalorder %s45, %s59
    %p61 = scmp.eq.s32.totalorder %s14, 0
    %p62 = por %p60, %p61
    %s63 = ssub.s32 %s8, %s15
    %p64 = scmp.eq.s32.totalorder %s63, 0
    %s66 = sadd.s32 %s65, 1
    %s67 = scalar_select %p64, %s65, %s66
    %p70 = pneg %p64
    %p71 = scmp.eq.s32.totalorder %s8, 1
    %p72 = por %p70, %p71
    %p73 = scmp.ne.s32.totalorder %s65, %s68
    %p74 = scmp.eq.s32.totalorder %s8, 0
    %p75 = por %p73, %p74
    %p76 = scmp.ne.s32.totalorder %s65, %s68
    %p77 = scmp.eq.s32.totalorder %s13, 1
    %p78 = por %p76, %p77
    %p79 = scmp.ne.s32.totalorder %s68, %s69
    %p80 = scmp.eq.s32.totalorder %s13, 0
    %p81 = por %p79, %p80
    %p82 = scmp.ne.s32.totalorder %s68, %s69
    %p83 = scmp.eq.s32.totalorder %s14, 1
    %p84 = por %p82, %p83
    %p86 = scmp.ne.s32.totalorder %s69, %s85
    %p87 = scmp.eq.s32.totalorder %s14, 0
    %p88 = por %p86, %p87
    %p89 = scmp.le.s32.totalorder 1, %s8
    %p90 = scmp.lt.s32.totalorder %s8, 3
    %p91 = pnand %p89, %p90
    %p92 = pneg %p91
    // Predicated region
    $region9: #{normed_linear.1} parent=5 // pred_check
      _
    $region10: #{normed_linear.1} parent=5 // pred_check_branch
      %94 = sbr.rel (%p91) target = $region12
    $region11: #{normed_linear.1} parent=5 // pred_region
      %s95 = ssub.s32 %s8, 1
      // Predicated region
      $region13: #{normed_linear.1} parent=11 // pred_check
        %p96 = pneg %p55
      $region14: #{normed_linear.1} parent=11 // pred_check_branch
        %98 = sbr.rel (%p96) target = $region16
      $region15: #{normed_linear.1} parent=11 // pred_region
        _
      $region16: #{normed_linear.1} parent=11 // pred_fallthru
        _
    $region12: #{normed_linear.1} parent=5 // pred_fallthru
      _
    %p99 = scmp.lt.s32.totalorder %s8, 2
    // Predicated region
    $region17: #{normed_linear.1} parent=5 // pred_check
      %p100 = pneg %p99
    $region18: #{normed_linear.1} parent=5 // pred_check_branch
      %102 = sbr.rel (%p100) target = $region20
    $region19: #{normed_linear.1} parent=5 // pred_region
      // Predicated region
      $region21: #{normed_linear.1} parent=19 // pred_check
        %p103 = pneg %p28
      $region22: #{normed_linear.1} parent=19 // pred_check_branch
        %105 = sbr.rel (%p103) target = $region24
      $region23: #{normed_linear.1} parent=19 // pred_region
        %p106 = scmp.lt.s32.totalorder %s8, 1
        %s107 = scalar_select %p106, %s8, 1
        %s108 = smul.addr %s107, 8
        %s109 = scalar_lea.vmem %s0, %s108
      $region24: #{normed_linear.1} parent=19 // pred_fallthru
        _
    $region20: #{normed_linear.1} parent=5 // pred_fallthru
      _
    %p110 = scmp.le.s32.totalorder 1, %s8
    %p111 = scmp.lt.s32.totalorder %s8, 3
    %p112 = pnand %p110, %p111
    %p113 = pneg %p112
    // Predicated region
    $region25: #{normed_linear.1} parent=5 // pred_check
      _
    $region26: #{normed_linear.1} parent=5 // pred_check_branch
      %115 = sbr.rel (%p112) target = $region28
    $region27: #{normed_linear.1} parent=5 // pred_region
      %s116 = ssub.s32 %s8, 1
      %p117 = scmp.lt.s32.totalorder %s13, 1
      %s118 = scalar_select %p117, %s13, 1
      %s119 = smul.addr %s118, 8
      %s120 = scalar_lea.vmem %s0, %s119
      %p121 = pneg %p34
      %p122 = pneg %p31
      %p123 = pneg %p55
      %p124 = pneg %p52
      %p125 = pneg %p81
      %p126 = pneg %p78
      %p127 = scmp.lt.s32.totalorder %s13, 1
      %s128 = scalar_select %p127, %s13, 1
      %s129 = smul.addr %s128, 8
      %s130 = scalar_lea.vmem %s2, %s129
      %p131 = scmp.lt.s32.totalorder %s13, 1
      %s132 = scalar_select %p131, %s13, 1
      %s133 = smul.addr %s132, 8
      %s134 = scalar_lea.vmem %s0, %s133
      %p135 = scmp.lt.s32.totalorder %s13, 1
      %s136 = scalar_select %p135, %s13, 1
      %s137 = smul.addr %s136, 8
      %s138 = scalar_lea.vmem %s2, %s137
      %v139 = vld [vmem:[%s134] sm:$0xff]
      %v140 = vmul.f32 %v139, %v139
      %vm141 = vcmask 261120
      %v142 = vsel %vm141, %v140, 0.0
      %143 = vadd.xlane.f32.xlu0 %v142
      %v144 = vpop.xlane.xlu0 %143
      %v145 = vmax.f32 %v144, 1e-24
      %v146 = vrsqrt.pop %v145
      %v147 = vld [vmem:[%s1] sm:$0xff]
      %v148 = vld [vmem:[%s1 + $0x8] sm:$0xff]
      %v149 = vld [vmem:[%s1 + $0x10] sm:$0xff]
      %v150 = vld [vmem:[%s1 + $0x18] sm:$0xff]
      %v152 = vsel %vm141, %v139, 0
      %154 = vmatprep.subr.mxu0 0.0
      %155 = vmatpush1.msra.mxu0 %v147
      %156 = vmatprep.subr.mxu0 0.0
      %157 = vmatpush1.msra.mxu0 %v148
      %158 = vmatprep.subr.mxu0 0.0
      %159 = vmatpush1.msra.mxu0 %v149
      %160 = vmatprep.subr.mxu0 0.0
      %161 = vmatpush1.msra.mxu0 %v150
      %162 = vmatprep.subr.mxu0 0.0
      %163 = vmatpush1.msra.mxu0 0.0
      %164 = vmatprep.subr.mxu0 0.0
      %165 = vmatpush1.msra.mxu0 0.0
      %166 = vmatprep.subr.mxu0 0.0
      %167 = vmatpush1.msra.mxu0 0.0
      %168 = vmatprep.subr.mxu0 0.0
      %169 = vmatpush1.msra.mxu0 0.0
      %170 = vmatprep.subr.mxu0 0.0
      %171 = vmatpush1.msra.mxu0 0.0
      %172 = vmatprep.subr.mxu0 0.0
      %173 = vmatpush1.msra.mxu0 0.0
      %174 = vmatprep.subr.mxu0 0.0
      %175 = vmatpush1.msra.mxu0 0.0
      %176 = vmatprep.subr.mxu0 0.0
      %177 = vmatpush1.msra.mxu0 0.0
      %178 = vmatprep.subr.mxu0 0.0
      %179 = vmatpush1.msra.mxu0 0.0
      %180 = vmatprep.subr.mxu0 0.0
      %181 = vmatpush1.msra.mxu0 0.0
      %182 = vmatprep.subr.mxu0 0.0
      %183 = vmatpush1.msra.mxu0 0.0
      %184 = vmatprep.subr.mxu0 0.0
      %185 = vmatpush1.msra.mxu0 0.0
      %186 = vmatprep.subr.mxu0 0.0
      %187 = vmatpush1.msra.mxu0 0.0
      %188 = vmatprep.subr.mxu0 0.0
      %189 = vmatpush1.msra.mxu0 0.0
      %190 = vmatprep.subr.mxu0 0.0
      %191 = vmatpush1.msra.mxu0 0.0
      %192 = vmatprep.subr.mxu0 0.0
      %193 = vmatpush1.msra.mxu0 0.0
      %194 = vmatprep.subr.mxu0 0.0
      %195 = vmatpush1.msra.mxu0 0.0
      %196 = vmatprep.subr.mxu0 0.0
      %197 = vmatpush1.msra.mxu0 0.0
      %198 = vmatprep.subr.mxu0 0.0
      %199 = vmatpush1.msra.mxu0 0.0
      %200 = vmatprep.subr.mxu0 0.0
      %201 = vmatpush1.msra.mxu0 0.0
      %202 = vmatprep.subr.mxu0 0.0
      %203 = vmatpush1.msra.mxu0 0.0
      %204 = vmatprep.subr.mxu0 0.0
      %205 = vmatpush1.msra.mxu0 0.0
      %206 = vmatprep.subr.mxu0 0.0
      %207 = vmatpush1.msra.mxu0 0.0
      %208 = vmatprep.subr.mxu0 0.0
      %209 = vmatpush1.msra.mxu0 0.0
      %210 = vmatprep.subr.mxu0 0.0
      %211 = vmatpush1.msra.mxu0 0.0
      %212 = vmatprep.subr.mxu0 0.0
      %213 = vmatpush1.msra.mxu0 0.0
      %214 = vmatprep.subr.mxu0 0.0
      %215 = vmatpush1.msra.mxu0 0.0
      %216 = vmatprep.subr.mxu0 0.0
      %217 = vmatpush1.msra.mxu0 0.0
      %218 = vmatprep.mubr.f32.mxu0 0.0
      %219 = vmatmul.mubr.f32.gmra.mrb[0].mxu0 %v152
      %v220 = vpop.f32.mrb[0].mxu0
      %v221 = vadd.f32 0.0, %v220
      %v222 = vpop.f32.mrb[0].mxu0
      %223 = vdwg.mxu0
      %v224 = vmul.f32 %v221, %v146
      %225 = vst [vmem:[%s138] sm:$0xff] %v224
      %p226 = scmp.lt.s32.totalorder %s13, 1
      %s227 = scalar_select %p226, %s13, 1
      %s228 = smul.addr %s227, 8
      %s229 = scalar_lea.vmem %s2, %s228
      // Predicated region
      $region29: #{normed_linear.1} parent=27 // pred_check
        %p230 = pneg %p78
      $region30: #{normed_linear.1} parent=27 // pred_check_branch
        %232 = sbr.rel (%p230) target = $region32
      $region31: #{normed_linear.1} parent=27 // pred_region
        _
      $region32: #{normed_linear.1} parent=27 // pred_fallthru
        _
    $region28: #{normed_linear.1} parent=5 // pred_fallthru
      _
    %p233 = scmp.le.s32.totalorder 2, %s8
    // Predicated region
    $region33: #{normed_linear.1} parent=5 // pred_check
      %p234 = pneg %p233
    $region34: #{normed_linear.1} parent=5 // pred_check_branch
      %236 = sbr.rel (%p234) target = $region36
    $region35: #{normed_linear.1} parent=5 // pred_region
      %s237 = ssub.s32 %s8, 2
      // Predicated region
      $region37: #{normed_linear.1} parent=35 // pred_check
        %p238 = pneg %p84
      $region38: #{normed_linear.1} parent=35 // pred_check_branch
        %240 = sbr.rel (%p238) target = $region40
      $region39: #{normed_linear.1} parent=35 // pred_region
        %p241 = scmp.lt.s32.totalorder %s14, 1
        %s242 = scalar_select %p241, %s14, 1
        %s243 = smul.addr %s242, 8
        %s244 = scalar_lea.vmem %s2, %s243
      $region40: #{normed_linear.1} parent=35 // pred_fallthru
        _
    $region36: #{normed_linear.1} parent=5 // pred_fallthru
      _
  $region6: #{normed_linear.1} parent=0 // loop_footer
    %s12 = sadd.s32 1, %s8
  $region7: #{normed_linear.1} parent=0 // loop_footer_branch
    %7 = sbr.rel target = $region3
  $region8: #{normed_linear.1} parent=0 // loop_exit
    _

</llo_original>
